<compile_context>
chip_gen: v5e
topology: v5e:2x2
jax: 0.10.0
libtpu: 0.0.40
codegen_flags: <defaults>
</compile_context>

<pallas_src>
import functools
import math

import jax
import jax.numpy as jnp
from jax import lax
from jax.experimental import pallas as pl
from jax.experimental.pallas import tpu as pltpu


def _round_up(x, m):
    return ((x + m - 1) // m) * m


def _flash_body(q_of, k_of, v_of, o_ref, m_sc, l_sc, acc_sc, *,
                scale, is_causal, num_heads, head_dim, tq, tk,
                compute_dtype, kv_valid_len):
    """Shared flash-attention grid-step body.

    q_of/k_of/v_of: callables h -> (rows, D) slice of the current tile.
    o_ref : (tq, H*D)      output slab (module layout, lane-dense)
    m_sc  : (H, tq, 1) f32 running max
    l_sc  : (H, tq, 1) f32 running sum
    acc_sc: (H, tq, D) f32 output accumulator
    """
    H, D = num_heads, head_dim
    qi = pl.program_id(1)
    ki = pl.program_id(2)
    n_kv = pl.num_programs(2)

    @pl.when(ki == 0)
    def _init():
        m_sc[...] = jnp.full(m_sc.shape, -jnp.inf, dtype=jnp.float32)
        l_sc[...] = jnp.zeros(l_sc.shape, dtype=jnp.float32)
        acc_sc[...] = jnp.zeros(acc_sc.shape, dtype=jnp.float32)

    def compute(diag):
        # diag=True only on diagonal-straddling tiles (causal); only those
        # (and padded-column tiles) pay for the (tq, tk) select.
        pad = (kv_valid_len is not None) and (diag or not is_causal)
        mask = None
        if diag or pad:
            row = qi * tq + lax.broadcasted_iota(jnp.int32, (tq, tk), 0)
            col = ki * tk + lax.broadcasted_iota(jnp.int32, (tq, tk), 1)
            if diag and pad:
                mask = (col <= row) & (col < kv_valid_len)
            elif diag:
                mask = col <= row
            else:
                mask = col < kv_valid_len

        for h in range(H):  # statically unrolled: keeps the MXU pipeline full
            # Fold the softmax scale into q (tq*D muls, not tq*tk), then feed
            # the MXU narrow operands with an f32 accumulator.
            qh = (q_of(h) * scale).astype(compute_dtype)        # (tq, D)
            kh = k_of(h).astype(compute_dtype)                  # (tk, D)
            vh = v_of(h).astype(compute_dtype)                  # (tk, D)

            # QK^T: contract head dims directly (no transpose), f32 acc.
            s = lax.dot_general(
                qh, kh,
                dimension_numbers=(((1,), (1,)), ((), ())),
                preferred_element_type=jnp.float32)             # (tq, tk)
            if mask is not None:
                s = jnp.where(mask, s, -jnp.inf)

            # Online (streaming) softmax, all in f32.
            m_prev = m_sc[h]                                    # (tq, 1)
            m_new = jnp.maximum(m_prev, jnp.max(s, axis=-1, keepdims=True))
            alpha = jnp.exp(m_prev - m_new)
            p = jnp.exp(s - m_new)
            l_sc[h] = alpha * l_sc[h] + jnp.sum(p, axis=-1, keepdims=True)
            acc_sc[h] = alpha * acc_sc[h] + jnp.dot(
                p.astype(compute_dtype), vh,
                preferred_element_type=jnp.float32)
            m_sc[h] = m_new

    if is_causal:
        # tq == tk: ki == qi is the only diagonal-straddling tile,
        # ki < qi tiles are fully below the diagonal (no mask needed),
        # ki > qi tiles are skipped entirely (their DMA is skipped by the
        # clamped kv index_map in the wrapper).
        @pl.when(ki == qi)
        def _():
            compute(diag=True)

        @pl.when(ki < qi)
        def _():
            compute(diag=False)
    else:
        compute(diag=False)

    @pl.when(ki == n_kv - 1)
    def _finalize():
        if D % 128 == 0:
            # Lane-aligned, unmasked per-head stores (no concat / relayout).
            for h in range(H):
                inv = pl.reciprocal(l_sc[h], approx=True)       # (tq, 1)
                o_ref[:, h * D:(h + 1) * D] = (acc_sc[h] * inv).astype(o_ref.dtype)
        else:
            outs = []
            for h in range(H):
                inv = pl.reciprocal(l_sc[h], approx=True)
                outs.append((acc_sc[h] * inv).astype(o_ref.dtype))
            o_ref[...] = jnp.concatenate(outs, axis=-1)


def _attend_kernel_split(q_ref, k_ref, v_ref, o_ref, m_sc, l_sc, acc_sc, *,
                         scale, is_causal, num_heads, head_dim, tq, tk,
                         compute_dtype, kv_valid_len):
    """Lane-blocked path: q_ref/k_ref/v_ref are (rows, H*D) plane blocks."""
    D = head_dim
    _flash_body(lambda h: q_ref[:, h * D:(h + 1) * D],
                lambda h: k_ref[:, h * D:(h + 1) * D],
                lambda h: v_ref[:, h * D:(h + 1) * D],
                o_ref, m_sc, l_sc, acc_sc,
                scale=scale, is_causal=is_causal, num_heads=num_heads,
                head_dim=head_dim, tq=tq, tk=tk,
                compute_dtype=compute_dtype, kv_valid_len=kv_valid_len)


def _attend_kernel_packed(q_ref, kv_ref, o_ref, m_sc, l_sc, acc_sc, *,
                          scale, is_causal, num_heads, head_dim, tq, tk,
                          compute_dtype, kv_valid_len):
    """Fallback (H*D not a multiple of 128): full-lane packed qkv slabs."""
    D = head_dim
    HD = num_heads * D
    _flash_body(lambda h: q_ref[:, h * D:(h + 1) * D],
                lambda h: kv_ref[:, HD + h * D: HD + (h + 1) * D],
                lambda h: kv_ref[:, 2 * HD + h * D: 2 * HD + (h + 1) * D],
                o_ref, m_sc, l_sc, acc_sc,
                scale=scale, is_causal=is_causal, num_heads=num_heads,
                head_dim=head_dim, tq=tq, tk=tk,
                compute_dtype=compute_dtype, kv_valid_len=kv_valid_len)


def attend_forward(qkv, num_heads, head_dim, d_out, is_causal=False,
                   compute_dtype=None):
    """JAX/Pallas equivalent of Attend.forward (eval mode, dropout = 0)."""
    B, T, E = qkv.shape
    H, D = num_heads, head_dim
    HD = H * D
    assert E == 3 * HD, "qkv last dim must be 3 * num_heads * head_dim"
    assert d_out == HD, "d_out must equal num_heads * head_dim"

    in_dtype = qkv.dtype
    if compute_dtype is None:
        # bf16 MXU operands (f32 accumulation) — standard flash practice.
        compute_dtype = jnp.bfloat16 if in_dtype == jnp.float32 else in_dtype
    itemsize = jnp.dtype(in_dtype).itemsize

    lane_split = (HD % 128 == 0)

    # ---- generation-aware VMEM budget (v5e/v6e: 128 MiB, v7x: 64 MiB) ----
    vmem_cap = 64 * 1024 * 1024          # conservative default (v7x-sized)
    try:
        cap = getattr(pltpu.get_tpu_info(), "vmem_capacity_bytes", None)
        if cap:
            vmem_cap = int(cap)
    except Exception:
        pass
    vmem_limit = min((vmem_cap * 3) // 4, 100 * 1024 * 1024)
    tile_budget = (vmem_limit * 3) // 5

    def vmem_usage(t):
        if lane_split:
            in_bytes = 3 * t * HD * itemsize          # q + k + v tiles
        else:
            in_bytes = 2 * t * E * itemsize           # q slab + kv slab
        out_bytes = t * HD * itemsize
        io = 2 * (in_bytes + out_bytes)               # double buffered
        # m/l are (H, t, 1) f32 -> lane-padded to 128; acc lane-pads D to 128.
        scratch = 4 * H * t * (2 * 128 + _round_up(D, 128))
        return io + scratch

    # ---- tile selection (tq == tk) ---------------------------------------
    max_rows = 512
    # Megacore (v7x): with a single batch keep >= 2 query tiles so both
    # TensorCores get work.
    div_cap = T if B > 1 else max(8, T // 2)
    tile = None
    for t in range(8, min(T, max_rows, div_cap) + 1, 8):
        if T % t == 0 and vmem_usage(t) <= tile_budget:
            tile = t
    if tile is not None:
        T_pad = T
    elif T <= 8:
        tile, T_pad = T, T                      # full-extent block is legal
    else:
        # No multiple-of-8 divisor of T under the cap: pad T to a tileable
        # length and mask the padded key columns in-kernel.
        tile = 8
        limit = min(max_rows, _round_up(T, 8))
        while tile * 2 <= limit and vmem_usage(tile * 2) <= tile_budget:
            tile *= 2
        T_pad = _round_up(T, tile)

    tq = tk = tile
    n_q = T_pad // tq
    n_kv = T_pad // tk

    if T_pad != T:
        qkv_in = jnp.pad(qkv, ((0, 0), (0, T_pad - T), (0, 0)))
        kv_valid_len = T
    else:
        qkv_in = qkv
        kv_valid_len = None

    scale = 1.0 / math.sqrt(D)
    common = dict(scale=scale, is_causal=is_causal, num_heads=H, head_dim=D,
                  tq=tq, tk=tk, compute_dtype=compute_dtype,
                  kv_valid_len=kv_valid_len)

    if is_causal:
        # With tq == tk the last key block needed by query tile qi is qi.
        # Clamping makes above-diagonal steps repeat the previous block
        # index, so Pallas skips the DMA, not just the compute.
        kv_block = lambda qi, ki: jnp.minimum(ki, qi)
    else:
        kv_block = lambda qi, ki: ki

    if lane_split:
        kernel = functools.partial(_attend_kernel_split, **common)
        in_specs = [
            pl.BlockSpec((None, tq, HD), lambda b, qi, ki: (b, qi, 0)),
            pl.BlockSpec((None, tk, HD),
                         lambda b, qi, ki: (b, kv_block(qi, ki), 1)),
            pl.BlockSpec((None, tk, HD),
                         lambda b, qi, ki: (b, kv_block(qi, ki), 2)),
        ]
        inputs = (qkv_in, qkv_in, qkv_in)
    else:
        kernel = functools.partial(_attend_kernel_packed, **common)
        in_specs = [
            pl.BlockSpec((None, tq, E), lambda b, qi, ki: (b, qi, 0)),
            pl.BlockSpec((None, tk, E),
                         lambda b, qi, ki: (b, kv_block(qi, ki), 0)),
        ]
        inputs = (qkv_in, qkv_in)

    out_spec = pl.BlockSpec((None, tq, HD), lambda b, qi, ki: (b, qi, 0))

    # Cost hint (accounts for kv re-streaming and the causal halving).
    q_row_bytes = (HD if lane_split else E) * itemsize
    kv_row_bytes = (2 * HD if lane_split else E) * itemsize
    kv_passes = max(1, (n_q + 1) // 2) if is_causal else n_q
    flops = 4 * B * H * T_pad * T_pad * D
    softmax_terms = B * H * T_pad * T_pad
    if is_causal:
        flops //= 2
        softmax_terms //= 2
    cost = pl.CostEstimate(
        flops=max(int(flops), 1),
        transcendentals=max(int(softmax_terms), 1),
        bytes_accessed=int(B * T_pad * (q_row_bytes + kv_passes * kv_row_bytes)
                           + B * T_pad * HD * itemsize),
    )

    out = pl.pallas_call(
        kernel,
        out_shape=jax.ShapeDtypeStruct((B, T_pad, HD), in_dtype),
        grid_spec=pltpu.PrefetchScalarGridSpec(
            num_scalar_prefetch=0,
            grid=(B, n_q, n_kv),
            in_specs=in_specs,
            out_specs=out_spec,
            scratch_shapes=[
                pltpu.VMEM((H, tq, 1), jnp.float32),   # running max m
                pltpu.VMEM((H, tq, 1), jnp.float32),   # running sum l
                pltpu.VMEM((H, tq, D), jnp.float32),   # f32 accumulator
            ],
        ),
        compiler_params=pltpu.CompilerParams(
            dimension_semantics=("parallel", "parallel", "arbitrary"),
            vmem_limit_bytes=int(vmem_limit)),
        cost_estimate=cost,
    )(*inputs)

    if T_pad != T:
        out = out[:, :T, :]
    return out  # (B, T, d_out), module output layout


def _reference(qkv, num_heads, head_dim, d_out, is_causal=False):
    """Pure-JAX reference matching F.scaled_dot_product_attention semantics."""
    B, T, _ = qkv.shape
    qkv_r = qkv.reshape(B, T, 3, num_heads, head_dim)
    qkv_p = jnp.transpose(qkv_r, (2, 0, 3, 1, 4))
    q, k, v = qkv_p[0], qkv_p[1], qkv_p[2]
    scale = 1.0 / math.sqrt(head_dim)
    s = jnp.einsum("bhtd,bhsd->bhts", q, k).astype(jnp.float32) * scale
    if is_causal:
        row = jnp.arange(T)[:, None]
        col = jnp.arange(T)[None, :]
        s = jnp.where(col <= row, s, -jnp.inf)
    p = jax.nn.softmax(s, axis=-1)
    o = jnp.einsum("bhts,bhsd->bhtd", p, v.astype(jnp.float32))
    return jnp.transpose(o, (0, 2, 1, 3)).reshape(B, T, d_out).astype(qkv.dtype)


def _check(qkv, num_heads, head_dim, d_out, is_causal):
    out = attend_forward(qkv, num_heads, head_dim, d_out, is_causal=is_causal)
    out = jax.block_until_ready(out)
    ref = _reference(qkv, num_heads, head_dim, d_out, is_causal=is_causal)
    assert out.shape == ref.shape
    # Tolerance accounts for bf16 MXU operands (f32 input) and the
    # approximate EUP reciprocal in the finalize.
    err = float(jnp.max(jnp.abs(out.astype(jnp.float32) - ref.astype(jnp.float32))))
    assert jnp.allclose(out.astype(jnp.float32), ref.astype(jnp.float32),
                        atol=3e-2, rtol=3e-2), (
        f"mismatch: max abs err {err} (causal={is_causal}, "
        f"shape={qkv.shape}, H={num_heads}, D={head_dim})")


if __name__ == "__main__":
    key = jax.random.PRNGKey(0)

    # (num_heads, head_dim, batch, seq) — exercises:
    #   HD=32  -> packed full-lane fallback, single tile
    #   HD=128 -> lane-blocked q/k/v specs, 2x2 tiles, B=1 megacore split,
    #             causal DMA-skip via clamped kv index_map
    #   T=20   -> non-tileable T: zero padding + key-column mask
    #   D=128  -> lane-aligned per-head output stores in the finalize
    cases = [
        (2, 16, 2, 8),
        (2, 64, 1, 512),
        (2, 16, 1, 20),
        (2, 128, 2, 256),
    ]
    for (H, D, B, T) in cases:
        d_out = H * D
        subkey, key = jax.random.split(key)
        qkv = jax.random.normal(subkey, (B, T, 3 * H * D), dtype=jnp.float32)
        for causal in (False, True):
            _check(qkv, H, D, d_out, is_causal=causal)

    print("KERNEL_OK")
</pallas_src>

<mosaic_0001>
module attributes {stable_mosaic.version = 11 : i64} {
  func.func @_attend_kernel_packed(%arg0: i32, %arg1: i32, %arg2: i32, %arg3: memref<1x8x96xf32, #tpu.memory_space<vmem>>, %arg4: memref<1x8x96xf32, #tpu.memory_space<vmem>>, %arg5: memref<1x8x32xf32, #tpu.memory_space<vmem>>, %arg6: memref<2x8x1xf32, #tpu.memory_space<vmem>>, %arg7: memref<2x8x1xf32, #tpu.memory_space<vmem>>, %arg8: memref<2x8x16xf32, #tpu.memory_space<vmem>>) attributes {dimension_semantics = [#tpu.dimension_semantics<parallel>, #tpu.dimension_semantics<parallel>, #tpu.dimension_semantics<arbitrary>], iteration_bounds = array<i64: 2, 1, 1>, scalar_prefetch = 0 : i64, scratch_operands = 3 : i64, tpu.core_type = #tpu.core_type<tc>, window_params = [{transform_indices = @transform_0, window_bounds = array<i64: 1, 8, 96>}, {transform_indices = @transform_1, window_bounds = array<i64: 1, 8, 96>}, {transform_indices = @transform_2, window_bounds = array<i64: 1, 8, 32>}]} {
    %c0_i32 = arith.constant 0 : i32
    %0 = arith.cmpi eq, %arg2, %c0_i32 : i32
    %1 = arith.extui %0 : i1 to i32
    %c0_i32_0 = arith.constant 0 : i32
    %2 = arith.cmpi ne, %1, %c0_i32_0 : i32
    scf.if %2 {
      %cst_59 = arith.constant 0xFF800000 : f32
      %94 = vector.broadcast %cst_59 : f32 to vector<2x8x1xf32>
      %c0_60 = arith.constant 0 : index
      %c0_61 = arith.constant 0 : index
      %c0_62 = arith.constant 0 : index
      %95 = vector.load %arg6[%c0_60, %c0_61, %c0_62] : memref<2x8x1xf32, #tpu.memory_space<vmem>>, vector<2x8x1xf32>
      tpu.vector_store %arg6[%c0_60, %c0_61, %c0_62], %94 {strides = array<i32>} : memref<2x8x1xf32, #tpu.memory_space<vmem>>, vector<2x8x1xf32>,
      %cst_63 = arith.constant 0.000000e+00 : f32
      %96 = vector.broadcast %cst_63 : f32 to vector<2x8x1xf32>
      %c0_64 = arith.constant 0 : index
      %c0_65 = arith.constant 0 : index
      %c0_66 = arith.constant 0 : index
      %97 = vector.load %arg7[%c0_64, %c0_65, %c0_66] : memref<2x8x1xf32, #tpu.memory_space<vmem>>, vector<2x8x1xf32>
      tpu.vector_store %arg7[%c0_64, %c0_65, %c0_66], %96 {strides = array<i32>} : memref<2x8x1xf32, #tpu.memory_space<vmem>>, vector<2x8x1xf32>,
      %cst_67 = arith.constant 0.000000e+00 : f32
      %98 = vector.broadcast %cst_67 : f32 to vector<2x8x16xf32>
      %c0_68 = arith.constant 0 : index
      %c0_69 = arith.constant 0 : index
      %c0_70 = arith.constant 0 : index
      %99 = vector.load %arg8[%c0_68, %c0_69, %c0_70] : memref<2x8x16xf32, #tpu.memory_space<vmem>>, vector<2x8x16xf32>
      tpu.vector_store %arg8[%c0_68, %c0_69, %c0_70], %98 {strides = array<i32>} : memref<2x8x16xf32, #tpu.memory_space<vmem>>, vector<2x8x16xf32>,
    } else {
    }
    %c0 = arith.constant 0 : index
    %c0_1 = arith.constant 0 : index
    %c0_2 = arith.constant 0 : index
    %3 = vector.load %arg3[%c0, %c0_1, %c0_2] : memref<1x8x96xf32, #tpu.memory_space<vmem>>, vector<1x8x16xf32>
    %4 = vector.shape_cast %3 : vector<1x8x16xf32> to vector<8x16xf32>
    %cst = arith.constant 2.500000e-01 : f32
    %5 = vector.broadcast %cst : f32 to vector<8x16xf32>
    %6 = arith.mulf %4, %5 : vector<8x16xf32>
    %7 = arith.truncf %6 : vector<8x16xf32> to vector<8x16xbf16>
    %c0_3 = arith.constant 0 : index
    %c0_4 = arith.constant 0 : index
    %c32 = arith.constant 32 : index
    %8 = vector.load %arg4[%c0_3, %c0_4, %c32] : memref<1x8x96xf32, #tpu.memory_space<vmem>>, vector<1x8x16xf32>
    %9 = vector.shape_cast %8 : vector<1x8x16xf32> to vector<8x16xf32>
    %10 = arith.truncf %9 : vector<8x16xf32> to vector<8x16xbf16>
    %c0_5 = arith.constant 0 : index
    %c0_6 = arith.constant 0 : index
    %c64 = arith.constant 64 : index
    %11 = vector.load %arg4[%c0_5, %c0_6, %c64] : memref<1x8x96xf32, #tpu.memory_space<vmem>>, vector<1x8x16xf32>
    %12 = vector.shape_cast %11 : vector<1x8x16xf32> to vector<8x16xf32>
    %13 = arith.truncf %12 : vector<8x16xf32> to vector<8x16xbf16>
    %cst_7 = arith.constant dense<0.000000e+00> : vector<8x8xf32>
    %14 = tpu.matmul %7, %10, %cst_7 {dimension_numbers = #tpu.dot_dimension_numbers<[1], [1], [0], [0], [0, 0, 1, 0], [], []>} : vector<8x16xbf16>, vector<8x16xbf16>, vector<8x8xf32> -> vector<8x8xf32>
    %c0_8 = arith.constant 0 : index
    %c0_9 = arith.constant 0 : index
    %c0_10 = arith.constant 0 : index
    %15 = vector.load %arg6[%c0_8, %c0_9, %c0_10] : memref<2x8x1xf32, #tpu.memory_space<vmem>>, vector<1x8x1xf32>
    %16 = vector.shape_cast %15 : vector<1x8x1xf32> to vector<8x1xf32>
    %cst_11 = arith.constant dense<0xFF800000> : vector<8xf32>
    %17 = vector.multi_reduction <maximumf>, %14, %cst_11 [1] : vector<8x8xf32> to vector<8xf32>
    %18 = vector.shape_cast %17 : vector<8xf32> to vector<8x1xf32>
    %19 = arith.maximumf %16, %18 : vector<8x1xf32>
    %20 = arith.subf %16, %19 : vector<8x1xf32>
    %21 = math.exp %20 : vector<8x1xf32>
    %22 = vector.broadcast %19 : vector<8x1xf32> to vector<8x8xf32>
    %23 = arith.subf %14, %22 : vector<8x8xf32>
    %24 = math.exp %23 : vector<8x8xf32>
    %c0_12 = arith.constant 0 : index
    %c0_13 = arith.constant 0 : index
    %c0_14 = arith.constant 0 : index
    %25 = vector.load %arg7[%c0_12, %c0_13, %c0_14] : memref<2x8x1xf32, #tpu.memory_space<vmem>>, vector<1x8x1xf32>
    %26 = vector.shape_cast %25 : vector<1x8x1xf32> to vector<8x1xf32>
    %27 = arith.mulf %21, %26 : vector<8x1xf32>
    %cst_15 = arith.constant dense<0.000000e+00> : vector<8xf32>
    %28 = vector.multi_reduction <add>, %24, %cst_15 [1] : vector<8x8xf32> to vector<8xf32>
    %29 = vector.shape_cast %28 : vector<8xf32> to vector<8x1xf32>
    %30 = arith.addf %27, %29 : vector<8x1xf32>
    %c0_16 = arith.constant 0 : index
    %c0_17 = arith.constant 0 : index
    %c0_18 = arith.constant 0 : index
    %31 = vector.load %arg7[%c0_16, %c0_17, %c0_18] : memref<2x8x1xf32, #tpu.memory_space<vmem>>, vector<1x8x1xf32>
    %32 = vector.shape_cast %31 : vector<1x8x1xf32> to vector<8x1xf32>
    %33 = vector.shape_cast %30 : vector<8x1xf32> to vector<1x8x1xf32>
    tpu.vector_store %arg7[%c0_16, %c0_17, %c0_18], %33 {strides = array<i32>} : memref<2x8x1xf32, #tpu.memory_space<vmem>>, vector<1x8x1xf32>,
    %c0_19 = arith.constant 0 : index
    %c0_20 = arith.constant 0 : index
    %c0_21 = arith.constant 0 : index
    %34 = vector.load %arg8[%c0_19, %c0_20, %c0_21] : memref<2x8x16xf32, #tpu.memory_space<vmem>>, vector<1x8x16xf32>
    %35 = vector.shape_cast %34 : vector<1x8x16xf32> to vector<8x16xf32>
    %36 = vector.broadcast %21 : vector<8x1xf32> to vector<8x16xf32>
    %37 = arith.mulf %36, %35 : vector<8x16xf32>
    %38 = arith.truncf %24 : vector<8x8xf32> to vector<8x8xbf16>
    %cst_22 = arith.constant dense<0.000000e+00> : vector<8x16xf32>
    %39 = tpu.matmul %38, %13, %cst_22 {dimension_numbers = #tpu.dot_dimension_numbers<[1], [0], [0], [1], [0, 0, 1, 1], [], []>} : vector<8x8xbf16>, vector<8x16xbf16>, vector<8x16xf32> -> vector<8x16xf32>
    %40 = arith.addf %37, %39 : vector<8x16xf32>
    %c0_23 = arith.constant 0 : index
    %c0_24 = arith.constant 0 : index
    %c0_25 = arith.constant 0 : index
    %41 = vector.load %arg8[%c0_23, %c0_24, %c0_25] : memref<2x8x16xf32, #tpu.memory_space<vmem>>, vector<1x8x16xf32>
    %42 = vector.shape_cast %41 : vector<1x8x16xf32> to vector<8x16xf32>
    %43 = vector.shape_cast %40 : vector<8x16xf32> to vector<1x8x16xf32>
    tpu.vector_store %arg8[%c0_23, %c0_24, %c0_25], %43 {strides = array<i32>} : memref<2x8x16xf32, #tpu.memory_space<vmem>>, vector<1x8x16xf32>,
    %c0_26 = arith.constant 0 : index
    %c0_27 = arith.constant 0 : index
    %c0_28 = arith.constant 0 : index
    %44 = vector.load %arg6[%c0_26, %c0_27, %c0_28] : memref<2x8x1xf32, #tpu.memory_space<vmem>>, vector<1x8x1xf32>
    %45 = vector.shape_cast %44 : vector<1x8x1xf32> to vector<8x1xf32>
    %46 = vector.shape_cast %19 : vector<8x1xf32> to vector<1x8x1xf32>
    tpu.vector_store %arg6[%c0_26, %c0_27, %c0_28], %46 {strides = array<i32>} : memref<2x8x1xf32, #tpu.memory_space<vmem>>, vector<1x8x1xf32>,
    %c0_29 = arith.constant 0 : index
    %c0_30 = arith.constant 0 : index
    %c16 = arith.constant 16 : index
    %47 = vector.load %arg3[%c0_29, %c0_30, %c16] : memref<1x8x96xf32, #tpu.memory_space<vmem>>, vector<1x8x16xf32>
    %48 = vector.shape_cast %47 : vector<1x8x16xf32> to vector<8x16xf32>
    %cst_31 = arith.constant 2.500000e-01 : f32
    %49 = vector.broadcast %cst_31 : f32 to vector<8x16xf32>
    %50 = arith.mulf %48, %49 : vector<8x16xf32>
    %51 = arith.truncf %50 : vector<8x16xf32> to vector<8x16xbf16>
    %c0_32 = arith.constant 0 : index
    %c0_33 = arith.constant 0 : index
    %c48 = arith.constant 48 : index
    %52 = vector.load %arg4[%c0_32, %c0_33, %c48] : memref<1x8x96xf32, #tpu.memory_space<vmem>>, vector<1x8x16xf32>
    %53 = vector.shape_cast %52 : vector<1x8x16xf32> to vector<8x16xf32>
    %54 = arith.truncf %53 : vector<8x16xf32> to vector<8x16xbf16>
    %c0_34 = arith.constant 0 : index
    %c0_35 = arith.constant 0 : index
    %c80 = arith.constant 80 : index
    %55 = vector.load %arg4[%c0_34, %c0_35, %c80] : memref<1x8x96xf32, #tpu.memory_space<vmem>>, vector<1x8x16xf32>
    %56 = vector.shape_cast %55 : vector<1x8x16xf32> to vector<8x16xf32>
    %57 = arith.truncf %56 : vector<8x16xf32> to vector<8x16xbf16>
    %cst_36 = arith.constant dense<0.000000e+00> : vector<8x8xf32>
    %58 = tpu.matmul %51, %54, %cst_36 {dimension_numbers = #tpu.dot_dimension_numbers<[1], [1], [0], [0], [0, 0, 1, 0], [], []>} : vector<8x16xbf16>, vector<8x16xbf16>, vector<8x8xf32> -> vector<8x8xf32>
    %c1 = arith.constant 1 : index
    %c0_37 = arith.constant 0 : index
    %c0_38 = arith.constant 0 : index
    %59 = vector.load %arg6[%c1, %c0_37, %c0_38] : memref<2x8x1xf32, #tpu.memory_space<vmem>>, vector<1x8x1xf32>
    %60 = vector.shape_cast %59 : vector<1x8x1xf32> to vector<8x1xf32>
    %cst_39 = arith.constant dense<0xFF800000> : vector<8xf32>
    %61 = vector.multi_reduction <maximumf>, %58, %cst_39 [1] : vector<8x8xf32> to vector<8xf32>
    %62 = vector.shape_cast %61 : vector<8xf32> to vector<8x1xf32>
    %63 = arith.maximumf %60, %62 : vector<8x1xf32>
    %64 = arith.subf %60, %63 : vector<8x1xf32>
    %65 = math.exp %64 : vector<8x1xf32>
    %66 = vector.broadcast %63 : vector<8x1xf32> to vector<8x8xf32>
    %67 = arith.subf %58, %66 : vector<8x8xf32>
    %68 = math.exp %67 : vector<8x8xf32>
    %c1_40 = arith.constant 1 : index
    %c0_41 = arith.constant 0 : index
    %c0_42 = arith.constant 0 : index
    %69 = vector.load %arg7[%c1_40, %c0_41, %c0_42] : memref<2x8x1xf32, #tpu.memory_space<vmem>>, vector<1x8x1xf32>
    %70 = vector.shape_cast %69 : vector<1x8x1xf32> to vector<8x1xf32>
    %71 = arith.mulf %65, %70 : vector<8x1xf32>
    %cst_43 = arith.constant dense<0.000000e+00> : vector<8xf32>
    %72 = vector.multi_reduction <add>, %68, %cst_43 [1] : vector<8x8xf32> to vector<8xf32>
    %73 = vector.shape_cast %72 : vector<8xf32> to vector<8x1xf32>
    %74 = arith.addf %71, %73 : vector<8x1xf32>
    %c1_44 = arith.constant 1 : index
    %c0_45 = arith.constant 0 : index
    %c0_46 = arith.constant 0 : index
    %75 = vector.load %arg7[%c1_44, %c0_45, %c0_46] : memref<2x8x1xf32, #tpu.memory_space<vmem>>, vector<1x8x1xf32>
    %76 = vector.shape_cast %75 : vector<1x8x1xf32> to vector<8x1xf32>
    %77 = vector.shape_cast %74 : vector<8x1xf32> to vector<1x8x1xf32>
    tpu.vector_store %arg7[%c1_44, %c0_45, %c0_46], %77 {strides = array<i32>} : memref<2x8x1xf32, #tpu.memory_space<vmem>>, vector<1x8x1xf32>,
    %c1_47 = arith.constant 1 : index
    %c0_48 = arith.constant 0 : index
    %c0_49 = arith.constant 0 : index
    %78 = vector.load %arg8[%c1_47, %c0_48, %c0_49] : memref<2x8x16xf32, #tpu.memory_space<vmem>>, vector<1x8x16xf32>
    %79 = vector.shape_cast %78 : vector<1x8x16xf32> to vector<8x16xf32>
    %80 = vector.broadcast %65 : vector<8x1xf32> to vector<8x16xf32>
    %81 = arith.mulf %80, %79 : vector<8x16xf32>
    %82 = arith.truncf %68 : vector<8x8xf32> to vector<8x8xbf16>
    %cst_50 = arith.constant dense<0.000000e+00> : vector<8x16xf32>
    %83 = tpu.matmul %82, %57, %cst_50 {dimension_numbers = #tpu.dot_dimension_numbers<[1], [0], [0], [1], [0, 0, 1, 1], [], []>} : vector<8x8xbf16>, vector<8x16xbf16>, vector<8x16xf32> -> vector<8x16xf32>
    %84 = arith.addf %81, %83 : vector<8x16xf32>
    %c1_51 = arith.constant 1 : index
    %c0_52 = arith.constant 0 : index
    %c0_53 = arith.constant 0 : index
    %85 = vector.load %arg8[%c1_51, %c0_52, %c0_53] : memref<2x8x16xf32, #tpu.memory_space<vmem>>, vector<1x8x16xf32>
    %86 = vector.shape_cast %85 : vector<1x8x16xf32> to vector<8x16xf32>
    %87 = vector.shape_cast %84 : vector<8x16xf32> to vector<1x8x16xf32>
    tpu.vector_store %arg8[%c1_51, %c0_52, %c0_53], %87 {strides = array<i32>} : memref<2x8x16xf32, #tpu.memory_space<vmem>>, vector<1x8x16xf32>,
    %c1_54 = arith.constant 1 : index
    %c0_55 = arith.constant 0 : index
    %c0_56 = arith.constant 0 : index
    %88 = vector.load %arg6[%c1_54, %c0_55, %c0_56] : memref<2x8x1xf32, #tpu.memory_space<vmem>>, vector<1x8x1xf32>
    %89 = vector.shape_cast %88 : vector<1x8x1xf32> to vector<8x1xf32>
    %90 = vector.shape_cast %63 : vector<8x1xf32> to vector<1x8x1xf32>
    tpu.vector_store %arg6[%c1_54, %c0_55, %c0_56], %90 {strides = array<i32>} : memref<2x8x1xf32, #tpu.memory_space<vmem>>, vector<1x8x1xf32>,
    %c0_i32_57 = arith.constant 0 : i32
    %91 = arith.cmpi eq, %arg2, %c0_i32_57 : i32
    %92 = arith.extui %91 : i1 to i32
    %c0_i32_58 = arith.constant 0 : i32
    %93 = arith.cmpi ne, %92, %c0_i32_58 : i32
    scf.if %93 {
      %c0_59 = arith.constant 0 : index
      %c0_60 = arith.constant 0 : index
      %c0_61 = arith.constant 0 : index
      %94 = vector.load %arg7[%c0_59, %c0_60, %c0_61] : memref<2x8x1xf32, #tpu.memory_space<vmem>>, vector<1x8x1xf32>
      %95 = vector.shape_cast %94 : vector<1x8x1xf32> to vector<8x1xf32>
      %96 = tpu.reciprocal %95 {approx = true} : vector<8x1xf32> -> vector<8x1xf32>
      %c0_62 = arith.constant 0 : index
      %c0_63 = arith.constant 0 : index
      %c0_64 = arith.constant 0 : index
      %97 = vector.load %arg8[%c0_62, %c0_63, %c0_64] : memref<2x8x16xf32, #tpu.memory_space<vmem>>, vector<1x8x16xf32>
      %98 = vector.shape_cast %97 : vector<1x8x16xf32> to vector<8x16xf32>
      %99 = vector.broadcast %96 : vector<8x1xf32> to vector<8x16xf32>
      %100 = arith.mulf %98, %99 : vector<8x16xf32>
      %c1_65 = arith.constant 1 : index
      %c0_66 = arith.constant 0 : index
      %c0_67 = arith.constant 0 : index
      %101 = vector.load %arg7[%c1_65, %c0_66, %c0_67] : memref<2x8x1xf32, #tpu.memory_space<vmem>>, vector<1x8x1xf32>
      %102 = vector.shape_cast %101 : vector<1x8x1xf32> to vector<8x1xf32>
      %103 = tpu.reciprocal %102 {approx = true} : vector<8x1xf32> -> vector<8x1xf32>
      %c1_68 = arith.constant 1 : index
      %c0_69 = arith.constant 0 : index
      %c0_70 = arith.constant 0 : index
      %104 = vector.load %arg8[%c1_68, %c0_69, %c0_70] : memref<2x8x16xf32, #tpu.memory_space<vmem>>, vector<1x8x16xf32>
      %105 = vector.shape_cast %104 : vector<1x8x16xf32> to vector<8x16xf32>
      %106 = vector.broadcast %103 : vector<8x1xf32> to vector<8x16xf32>
      %107 = arith.mulf %105, %106 : vector<8x16xf32>
      %108 = tpu.concatenate %100, %107 in 1 : vector<8x16xf32>, vector<8x16xf32> -> vector<8x32xf32>
      %c0_71 = arith.constant 0 : index
      %c0_72 = arith.constant 0 : index
      %c0_73 = arith.constant 0 : index
      %109 = vector.load %arg5[%c0_71, %c0_72, %c0_73] : memref<1x8x32xf32, #tpu.memory_space<vmem>>, vector<1x8x32xf32>
      %110 = vector.shape_cast %109 : vector<1x8x32xf32> to vector<8x32xf32>
      %111 = vector.shape_cast %108 : vector<8x32xf32> to vector<1x8x32xf32>
      tpu.vector_store %arg5[%c0_71, %c0_72, %c0_73], %111 {strides = array<i32>} : memref<1x8x32xf32, #tpu.memory_space<vmem>>, vector<1x8x32xf32>,
    } else {
    }
    return
  }
  func.func @transform_0(%arg0: i32, %arg1: i32, %arg2: i32) -> (i32, i32, i32) {
    %c0_i32 = arith.constant 0 : i32
    %c0_i32_0 = arith.constant 0 : i32
    return %arg0, %arg1, %c0_i32 : i32, i32, i32
  }
  func.func @transform_1(%arg0: i32, %arg1: i32, %arg2: i32) -> (i32, i32, i32) {
    %c0_i32 = arith.constant 0 : i32
    %c0_i32_0 = arith.constant 0 : i32
    return %arg0, %arg2, %c0_i32 : i32, i32, i32
  }
  func.func @transform_2(%arg0: i32, %arg1: i32, %arg2: i32) -> (i32, i32, i32) {
    %c0_i32 = arith.constant 0 : i32
    %c0_i32_0 = arith.constant 0 : i32
    return %arg0, %arg1, %c0_i32 : i32, i32, i32
  }
}

</mosaic_0001>

<llo_original>
// kernel: tpu_custom_call.1
$region0: #{tpu_custom_call.1}
  #allocation0 [shape = 'u32[]', space=smem, size = 0x4, offset = 0x4, fixed_abs, tag = 'smem constant byte address 0x4 - core index']
  #allocation1 [shape = 'u32[72,128]{1,0:T(1,128)}', space=vmem, size = 0x9000, scoped, tag = 'internal scratch']
  #allocation2 [shape = 'f32[2,8,1]{2,1,0:T(8,128)}', space=vmem, size = 0x2000, scoped, tag = 'scratch operand']
  #allocation3 [shape = 'f32[2,8,1]{2,1,0:T(8,128)}', space=vmem, size = 0x2000, scoped, tag = 'scratch operand']
  #allocation4 [shape = 'f32[2,8,16]{2,1,0:T(8,128)}', space=vmem, size = 0x2000, scoped, tag = 'scratch operand']
  %s0 = inlined_call_operand.hbm [shape: f32[2,8,96], index: 0, kind: input, shape index: {}]
  %s1 = inlined_call_operand.hbm [shape: f32[2,8,96], index: 1, kind: input, shape index: {}]
  %s2 = inlined_call_operand.hbm [shape: f32[2,8,32], index: 2, kind: output, shape index: {}]
  %s3 = sld [smem:[#allocation0]]
  $region57: #{tpu_custom_call.1} parent=0
    _
  %s5 = ssub.s32 1, %s3
  %s6 = scalar_select 0, %s5, %s3
  $region1: #{tpu_custom_call.1} parent=0
    #allocation5 [shape = 'u8[8192]{0}', space=vmem, size = 0x2000, scoped, tag = 'input window, operand 0']
    #allocation6 [shape = 's32[2]{0}', space=sflag, size = 0x8, scoped, tag = 'scoped memory for tpu_custom_call.1']
    #allocation7 [shape = 's32[2]{0}', space=sflag, size = 0x8, scoped, tag = 'scoped memory for tpu_custom_call.1']
    #allocation8 [shape = 'u8[8192]{0}', space=vmem, size = 0x2000, scoped, tag = 'input window, operand 1']
    #allocation9 [shape = 's32[2]{0}', space=sflag, size = 0x8, scoped, tag = 'scoped memory for tpu_custom_call.1']
    #allocation10 [shape = 'u8[8192]{0}', space=vmem, size = 0x2000, scoped, tag = 'output window, operand 0']
    %7 = vsyncpa [#allocation6], 0
    %s8 = scalar_lea.sflag [#allocation6], 1
    %9 = vsyncpa %s8, 0
    %10 = vsyncpa [#allocation9], 0
    %s11 = scalar_lea.sflag [#allocation9], 1
    %12 = vsyncpa %s11, 0
    %13 = vsyncpa [#allocation7], 0
    %s14 = scalar_lea.sflag [#allocation7], 1
    %15 = vsyncpa %s14, 0
    loop: start=0, step=1, limit=4
    $region2: #{tpu_custom_call.1} parent=1 // loop_pre_header
      _
    $region3: #{tpu_custom_call.1} parent=1 // loop_header
      %s17 = sphi 0, %s21
      %p18 = scmp.ge.s32.totalorder %s17, 4
      %s24 = sphi 0, %s43
      %s25 = sphi 0, %s39
      %s26 = sphi 0, %s35
      %s27 = sphi 0, %s24
      %s28 = sphi 0, %s25
      %s29 = sphi 0, %s26
      %s30 = sphi 0, %s27
      %s31 = sphi 0, %s28
      %s32 = sphi 0, %s29
      %s48 = sphi 0, %s50
      %s51 = sphi 0, %s48
      %s52 = sphi 0, %s51
      %s68 = sphi 0, %s52
      %s76 = sphi 0, %s78
      %s79 = sphi 0, %s76
      %s80 = sphi 0, %s79
      %s96 = sphi 0, %s80
      %s104 = sphi 0, %s106
      %s107 = sphi 0, %s104
      %s108 = sphi 0, %s107
      %s124 = sphi 0, %s108
    $region4: #{tpu_custom_call.1} parent=1 // loop_header_branch
      %20 = sbr.rel (%p18) target = $region8
    $region5: #{tpu_custom_call.1} parent=1 // loop_body
      %s22 = ssub.s32 %s17, 1
      %s23 = ssub.s32 %s17, 2
      %s33 = sadd.s32 1, %s26
      %p34 = scmp.ge.s32.totalorder %s33, 1
      %s35 = scalar_select %p34, 0, %s33
      %s36 = sadd.s32 1, %s25
      %s37 = scalar_select %p34, %s36, %s25
      %p38 = scmp.ge.s32.totalorder %s37, 1
      %s39 = scalar_select %p38, 0, %s37
      %s40 = sadd.s32 1, %s24
      %s41 = scalar_select %p38, %s40, %s24
      %p42 = scmp.ge.s32.totalorder %s41, 2
      %s43 = scalar_select %p42, 0, %s41
      %s44 = ssub.s32 %s24, %s43
      %s45 = ssub.s32 %s25, %s39
      %s46 = sor.u32 %s44, %s45
      %p47 = scmp.eq.s32.totalorder %s46, 0
      %s49 = sadd.s32 %s48, 1
      %s50 = scalar_select %p47, %s48, %s49
      %p53 = pneg %p47
      %p54 = scmp.eq.s32.totalorder %s17, 1
      %p55 = por %p53, %p54
      %p56 = scmp.ne.s32.totalorder %s48, %s51
      %p57 = scmp.eq.s32.totalorder %s17, 0
      %p58 = por %p56, %p57
      %p59 = scmp.ne.s32.totalorder %s48, %s51
      %p60 = scmp.eq.s32.totalorder %s22, 1
      %p61 = por %p59, %p60
      %p62 = scmp.ne.s32.totalorder %s51, %s52
      %p63 = scmp.eq.s32.totalorder %s22, 0
      %p64 = por %p62, %p63
      %p65 = scmp.ne.s32.totalorder %s51, %s52
      %p66 = scmp.eq.s32.totalorder %s23, 1
      %p67 = por %p65, %p66
      %p69 = scmp.ne.s32.totalorder %s52, %s68
      %p70 = scmp.eq.s32.totalorder %s23, 0
      %p71 = por %p69, %p70
      %s72 = ssub.s32 %s24, %s43
      %s73 = ssub.s32 %s26, %s35
      %s74 = sor.u32 %s72, %s73
      %p75 = scmp.eq.s32.totalorder %s74, 0
      %s77 = sadd.s32 %s76, 1
      %s78 = scalar_select %p75, %s76, %s77
      %p81 = pneg %p75
      %p82 = scmp.eq.s32.totalorder %s17, 1
      %p83 = por %p81, %p82
      %p84 = scmp.ne.s32.totalorder %s76, %s79
      %p85 = scmp.eq.s32.totalorder %s17, 0
      %p86 = por %p84, %p85
      %p87 = scmp.ne.s32.totalorder %s76, %s79
      %p88 = scmp.eq.s32.totalorder %s22, 1
      %p89 = por %p87, %p88
      %p90 = scmp.ne.s32.totalorder %s79, %s80
      %p91 = scmp.eq.s32.totalorder %s22, 0
      %p92 = por %p90, %p91
      %p93 = scmp.ne.s32.totalorder %s79, %s80
      %p94 = scmp.eq.s32.totalorder %s23, 1
      %p95 = por %p93, %p94
      %p97 = scmp.ne.s32.totalorder %s80, %s96
      %p98 = scmp.eq.s32.totalorder %s23, 0
      %p99 = por %p97, %p98
      %s100 = ssub.s32 %s24, %s43
      %s101 = ssub.s32 %s25, %s39
      %s102 = sor.u32 %s100, %s101
      %p103 = scmp.eq.s32.totalorder %s102, 0
      %s105 = sadd.s32 %s104, 1
      %s106 = scalar_select %p103, %s104, %s105
      %p109 = pneg %p103
      %p110 = scmp.eq.s32.totalorder %s17, 1
      %p111 = por %p109, %p110
      %p112 = scmp.ne.s32.totalorder %s104, %s107
      %p113 = scmp.eq.s32.totalorder %s17, 0
      %p114 = por %p112, %p113
      %p115 = scmp.ne.s32.totalorder %s104, %s107
      %p116 = scmp.eq.s32.totalorder %s22, 1
      %p117 = por %p115, %p116
      %p118 = scmp.ne.s32.totalorder %s107, %s108
      %p119 = scmp.eq.s32.totalorder %s22, 0
      %p120 = por %p118, %p119
      %p121 = scmp.ne.s32.totalorder %s107, %s108
      %p122 = scmp.eq.s32.totalorder %s23, 1
      %p123 = por %p121, %p122
      %p125 = scmp.ne.s32.totalorder %s108, %s124
      %p126 = scmp.eq.s32.totalorder %s23, 0
      %p127 = por %p125, %p126
      %p128 = scmp.le.s32.totalorder 1, %s17
      %p129 = scmp.lt.s32.totalorder %s17, 3
      %p130 = pnand %p128, %p129
      %p131 = pneg %p130
      // Predicated region
      $region9: #{tpu_custom_call.1} parent=5 // pred_check
        _
      $region10: #{tpu_custom_call.1} parent=5 // pred_check_branch
        %133 = sbr.rel (%p130) target = $region12
      $region11: #{tpu_custom_call.1} parent=5 // pred_region
        %s134 = ssub.s32 %s17, 1
      $region12: #{tpu_custom_call.1} parent=5 // pred_fallthru
        _
      %p135 = scmp.lt.s32.totalorder %s17, 2
      // Predicated region
      $region13: #{tpu_custom_call.1} parent=5 // pred_check
        %p136 = pneg %p135
      $region14: #{tpu_custom_call.1} parent=5 // pred_check_branch
        %138 = sbr.rel (%p136) target = $region16
      $region15: #{tpu_custom_call.1} parent=5 // pred_region
        // Predicated region
        $region17: #{tpu_custom_call.1} parent=15 // pred_check
          %p139 = pneg %p58
        $region18: #{tpu_custom_call.1} parent=15 // pred_check_branch
          %141 = sbr.rel (%p139) target = $region20
        $region19: #{tpu_custom_call.1} parent=15 // pred_region
          %s142 = sand.u32 %s48, 1
          %s143 = scalar_lea.sflag [#allocation6], %s142
          %s144 = sand.u32 %s48, 1
          %s145 = smul.addr %s144, 8
          %s146 = scalar_lea.vmem [#allocation5], %s145
          %148 = vsyncadd %s143, 0
          %s149 = sadd.s32 %s25, %s24
          %s150 = smul.addr %s149, 8
          %s151 = scalar_lea.hbm %s0, %s150
          %s153 = sshll.u32 %s151, 4
          %s154 = int_to_ptr.hbm [resolvable:$true] %s153
          %s155 = sshll.u32 %s146, 4
          %s156 = int_to_ptr.vmem [resolvable:$true] %s155
          %158 = dma.hbm_to_vmem [thread:$0]  %s154, 128, %s156, %s143
        $region20: #{tpu_custom_call.1} parent=15 // pred_fallthru
          _
        // Predicated region
        $region21: #{tpu_custom_call.1} parent=15 // pred_check
          %p159 = pneg %p86
        $region22: #{tpu_custom_call.1} parent=15 // pred_check_branch
          %161 = sbr.rel (%p159) target = $region24
        $region23: #{tpu_custom_call.1} parent=15 // pred_region
          %s162 = sand.u32 %s76, 1
          %s163 = scalar_lea.sflag [#allocation9], %s162
          %s164 = sand.u32 %s76, 1
          %s165 = smul.addr %s164, 8
          %s166 = scalar_lea.vmem [#allocation8], %s165
          %168 = vsyncadd %s163, 0
          %s169 = sadd.s32 %s26, %s24
          %s170 = smul.addr %s169, 8
          %s171 = scalar_lea.hbm %s1, %s170
          %s173 = sshll.u32 %s171, 4
          %s174 = int_to_ptr.hbm [resolvable:$true] %s173
          %s175 = sshll.u32 %s166, 4
          %s176 = int_to_ptr.vmem [resolvable:$true] %s175
          %178 = dma.hbm_to_vmem [thread:$0]  %s174, 128, %s176, %s163
        $region24: #{tpu_custom_call.1} parent=15 // pred_fallthru
          _
      $region16: #{tpu_custom_call.1} parent=5 // pred_fallthru
        _
      %p179 = scmp.le.s32.totalorder 1, %s17
      %p180 = scmp.lt.s32.totalorder %s17, 3
      %p181 = pnand %p179, %p180
      %p182 = pneg %p181
      // Predicated region
      $region25: #{tpu_custom_call.1} parent=5 // pred_check
        _
      $region26: #{tpu_custom_call.1} parent=5 // pred_check_branch
        %184 = sbr.rel (%p181) target = $region28
      $region27: #{tpu_custom_call.1} parent=5 // pred_region
        %s185 = ssub.s32 %s17, 1
        %s186 = sand.u32 %s51, 1
        %s187 = scalar_lea.sflag [#allocation6], %s186
        %s188 = sand.u32 %s51, 1
        %s189 = smul.addr %s188, 8
        %s190 = scalar_lea.vmem [#allocation5], %s189
        // Predicated region
        $region29: #{tpu_custom_call.1} parent=27 // pred_check
          %p191 = pneg %p64
        $region30: #{tpu_custom_call.1} parent=27 // pred_check_branch
          %193 = sbr.rel (%p191) target = $region32
        $region31: #{tpu_custom_call.1} parent=27 // pred_region
          %195 = dma.done %s187, 128
        $region32: #{tpu_custom_call.1} parent=27 // pred_fallthru
          _
        %s196 = sand.u32 %s79, 1
        %s197 = scalar_lea.sflag [#allocation9], %s196
        %s198 = sand.u32 %s79, 1
        %s199 = smul.addr %s198, 8
        %s200 = scalar_lea.vmem [#allocation8], %s199
        // Predicated region
        $region33: #{tpu_custom_call.1} parent=27 // pred_check
          %p201 = pneg %p92
        $region34: #{tpu_custom_call.1} parent=27 // pred_check_branch
          %203 = sbr.rel (%p201) target = $region36
        $region35: #{tpu_custom_call.1} parent=27 // pred_region
          %205 = dma.done %s197, 128
        $region36: #{tpu_custom_call.1} parent=27 // pred_fallthru
          _
        %s206 = sand.u32 %s51, 1
        %s207 = scalar_lea.sflag [#allocation6], %s206
        %s208 = sand.u32 %s51, 1
        %s209 = smul.addr %s208, 8
        %s210 = scalar_lea.vmem [#allocation5], %s209
        %p211 = pneg %p64
        %p212 = pneg %p61
        %s213 = sand.u32 %s79, 1
        %s214 = scalar_lea.sflag [#allocation9], %s213
        %s215 = sand.u32 %s79, 1
        %s216 = smul.addr %s215, 8
        %s217 = scalar_lea.vmem [#allocation8], %s216
        %p218 = pneg %p92
        %p219 = pneg %p89
        %p220 = pneg %p120
        %p221 = pneg %p117
        %s222 = sand.u32 %s107, 1
        %s223 = scalar_lea.sflag [#allocation7], %s222
        %s224 = sand.u32 %s107, 1
        %s225 = smul.addr %s224, 8
        %s226 = scalar_lea.vmem [#allocation10], %s225
        %p228 = scmp.eq.s32.totalorder %s29, 0
        // Predicated region
        $region37: #{tpu_custom_call.1} parent=27 // pred_check
          %p229 = pneg %p228
        $region38: #{tpu_custom_call.1} parent=27 // pred_check_branch
          %231 = sbr.rel (%p229) target = $region40
        $region39: #{tpu_custom_call.1} parent=27 // pred_region
          %vm232 = vcmask 7168
          %233 = vst.msk [vmem:[#allocation2] sm:$0xff] %vm232, -inf
          %234 = vst.msk [vmem:[#allocation2 + $0x8] sm:$0xff] %vm232, -inf
          %235 = vst.msk [vmem:[#allocation3] sm:$0xff] %vm232, 0.0
          %236 = vst.msk [vmem:[#allocation3 + $0x8] sm:$0xff] %vm232, 0.0
          %vm237 = vcmask 130048
          %238 = vst.msk [vmem:[#allocation4] sm:$0xff] %vm237, 0.0
          %239 = vst.msk [vmem:[#allocation4 + $0x8] sm:$0xff] %vm237, 0.0
        $region40: #{tpu_custom_call.1} parent=27 // pred_fallthru
          _
        %v240 = vld [vmem:[%s190] sm:$0xff]
        %v241 = vmul.f32 %v240, 0.25
        %v242 = vpack.c.bf16 %v241, %v241
        %v243 = vld [vmem:[%s200] sm:$0xff]
        %v244 = vpack.c.bf16 %v243, %v243
        %246 = vrot.lane.b32.xlu0 %v244, 96
        %v247 = vpop.permute.xlu0 %246
        %vm248 = vcmask 130048
        %v250 = vsel %vm248, %v242, 0
        %v253 = vsel %vm248, %v247, 0
        %255 = vmatpush.bf16.xpose.msra.mxu0 0
        %256 = vmatpush.bf16.xpose.msra.mxu0 0
        %257 = vmatpush.bf16.xpose.msra.mxu0 0
        %258 = vmatpush.bf16.xpose.msra.mxu0 0
        %259 = vmatpush.bf16.xpose.msra.mxu0 0
        %260 = vmatpush.bf16.xpose.msra.mxu0 0
        %261 = vmatpush.bf16.xpose.msra.mxu0 0
        %262 = vmatpush.bf16.xpose.msra.mxu0 %v253
        %263 = vmatmul.bf16.gmra.mxu0 %v250
        %v264 = vpop.f32.mrf.mxu0
        %v265 = vadd.f32 0.0, %v264
        %v266 = vpop.f32.mrf.mxu0
        %267 = vdwg.mxu0
        %v268 = vld [vmem:[#allocation2] sm:$0xff]
        %vm269 = vcmask 64512
        %v270 = vsel %vm269, %v265, -inf
        %271 = vmax.xlane.f32.xlu0 %v270
        %v272 = vpop.xlane.xlu0 %271
        %v273 = vmax.f32 %v268, %v272
        %v274 = vsub.f32 %v268, %v273
        %v275 = vmul.f32 %v274, 1.442695
        %v276 = vpow.pop %v275
        %278 = vset.pattern.permute.xlu0 0
        %279 = vperm.xlu0 %278, %v273
        %v280 = vpop.permute.xlu0 %279
        %v282 = vsub.f32 %v265, %v280
        %v283 = vmul.f32 %v282, 1.442695
        %v284 = vpow.pop %v283
        %v285 = vld [vmem:[#allocation3] sm:$0xff]
        %v286 = vmul.f32 %v276, %v285
        %v287 = vsel %vm269, %v284, 0.0
        %288 = vadd.xlane.f32.xlu0 %v287
        %v289 = vpop.xlane.xlu0 %288
        %v290 = vadd.f32 %v286, %v289
        %vm291 = vcmask 7168
        %292 = vst.msk [vmem:[#allocation3] sm:$0xff] %vm291, %v290
        %v293 = vld [vmem:[#allocation4] sm:$0xff]
        %295 = vset.pattern.permute.xlu0 0
        %296 = vperm.xlu0 %295, %v276
        %v297 = vpop.permute.xlu0 %296
        %v299 = vmul.f32 %v297, %v293
        %v300 = vpack.c.bf16 %v284, %v284
        %301 = vrot.lane.b32.xlu0 %v244, 64
        %v302 = vpop.permute.xlu0 %301
        %v304 = vsel %vm269, %v300, 0
        %vm306 = vcmask 1043456
        %v308 = vsel %vm306, %v302, 0
        %310 = vmatpush.bf16.msra.mxu0 0
        %311 = vmatpush.bf16.msra.mxu0 0
        %312 = vmatpush.bf16.msra.mxu0 0
        %313 = vmatpush.bf16.msra.mxu0 0
        %314 = vmatpush.bf16.msra.mxu0 0
        %315 = vmatpush.bf16.msra.mxu0 0
        %316 = vmatpush.bf16.msra.mxu0 0
        %317 = vmatpush.bf16.msra.mxu0 %v308
        %318 = vmatmul.bf16.gmra.mxu0 %v304
        %v319 = vpop.f32.mrf.mxu0
        %v320 = vadd.f32 0.0, %v319
        %v321 = vpop.f32.mrf.mxu0
        %322 = vdwg.mxu0
        %v323 = vadd.f32 %v299, %v320
        %324 = vst.msk [vmem:[#allocation4] sm:$0xff] %vm248, %v323
        %325 = vst.msk [vmem:[#allocation2] sm:$0xff] %vm291, %v273
        %v326 = vld [vmem:[%s190] sm:$0xff]
        %v327 = vmul.f32 %v326, 0.25
        %v328 = vpack.c.bf16 %v327, %v327
        %v329 = vld [vmem:[%s200] sm:$0xff]
        %v330 = vpack.c.bf16 %v329, %v329
        %332 = vrot.lane.b32.xlu0 %v328, 112
        %v333 = vpop.permute.xlu0 %332
        %335 = vrot.lane.b32.xlu0 %v330, 80
        %v336 = vpop.permute.xlu0 %335
        %v338 = vsel %vm248, %v333, 0
        %v341 = vsel %vm248, %v336, 0
        %343 = vmatpush.bf16.xpose.msra.mxu0 0
        %344 = vmatpush.bf16.xpose.msra.mxu0 0
        %345 = vmatpush.bf16.xpose.msra.mxu0 0
        %346 = vmatpush.bf16.xpose.msra.mxu0 0
        %347 = vmatpush.bf16.xpose.msra.mxu0 0
        %348 = vmatpush.bf16.xpose.msra.mxu0 0
        %349 = vmatpush.bf16.xpose.msra.mxu0 0
        %350 = vmatpush.bf16.xpose.msra.mxu0 %v341
        %351 = vmatmul.bf16.gmra.mxu0 %v338
        %v352 = vpop.f32.mrf.mxu0
        %v353 = vadd.f32 0.0, %v352
        %v354 = vpop.f32.mrf.mxu0
        %355 = vdwg.mxu0
        %s356 = scalar_lea.vmem [#allocation2], 8
        %v357 = vld [vmem:[%s356] sm:$0xff]
        %v358 = vsel %vm269, %v353, -inf
        %359 = vmax.xlane.f32.xlu0 %v358
        %v360 = vpop.xlane.xlu0 %359
        %v361 = vmax.f32 %v357, %v360
        %v362 = vsub.f32 %v357, %v361
        %v363 = vmul.f32 %v362, 1.442695
        %v364 = vpow.pop %v363
        %366 = vset.pattern.permute.xlu0 0
        %367 = vperm.xlu0 %366, %v361
        %v368 = vpop.permute.xlu0 %367
        %v370 = vsub.f32 %v353, %v368
        %v371 = vmul.f32 %v370, 1.442695
        %v372 = vpow.pop %v371
        %s373 = scalar_lea.vmem [#allocation3], 8
        %v374 = vld [vmem:[%s373] sm:$0xff]
        %v375 = vmul.f32 %v364, %v374
        %v376 = vsel %vm269, %v372, 0.0
        %377 = vadd.xlane.f32.xlu0 %v376
        %v378 = vpop.xlane.xlu0 %377
        %v379 = vadd.f32 %v375, %v378
        %380 = vst.msk [vmem:[%s373] sm:$0xff] %vm291, %v379
        %s381 = scalar_lea.vmem [#allocation4], 8
        %v382 = vld [vmem:[%s381] sm:$0xff]
        %384 = vset.pattern.permute.xlu0 0
        %385 = vperm.xlu0 %384, %v364
        %v386 = vpop.permute.xlu0 %385
        %v388 = vmul.f32 %v386, %v382
        %v389 = vpack.c.bf16 %v372, %v372
        %390 = vrot.lane.b32.xlu0 %v330, 48
        %v391 = vpop.permute.xlu0 %390
        %v393 = vsel %vm269, %v389, 0
        %v396 = vsel %vm306, %v391, 0
        %398 = vmatpush.bf16.msra.mxu0 0
        %399 = vmatpush.bf16.msra.mxu0 0
        %400 = vmatpush.bf16.msra.mxu0 0
        %401 = vmatpush.bf16.msra.mxu0 0
        %402 = vmatpush.bf16.msra.mxu0 0
        %403 = vmatpush.bf16.msra.mxu0 0
        %404 = vmatpush.bf16.msra.mxu0 0
        %405 = vmatpush.bf16.msra.mxu0 %v396
        %406 = vmatmul.bf16.gmra.mxu0 %v393
        %v407 = vpop.f32.mrf.mxu0
        %v408 = vadd.f32 0.0, %v407
        %v409 = vpop.f32.mrf.mxu0
        %410 = vdwg.mxu0
        %v411 = vadd.f32 %v388, %v408
        %412 = vst.msk [vmem:[%s381] sm:$0xff] %vm248, %v411
        %413 = vst.msk [vmem:[%s356] sm:$0xff] %vm291, %v361
        // Predicated region
        $region41: #{tpu_custom_call.1} parent=27 // pred_check
          %p414 = pneg %p228
        $region42: #{tpu_custom_call.1} parent=27 // pred_check_branch
          %416 = sbr.rel (%p414) target = $region44
        $region43: #{tpu_custom_call.1} parent=27 // pred_region
          %v417 = vld [vmem:[#allocation3] sm:$0xff]
          %v418 = vrcp.pop %v417
          %v419 = vld [vmem:[#allocation4] sm:$0xff]
          %421 = vset.pattern.permute.xlu0 0
          %422 = vperm.xlu0 %421, %v418
          %v423 = vpop.permute.xlu0 %422
          %v425 = vmul.f32 %v419, %v423
          %v426 = vld [vmem:[%s373] sm:$0xff]
          %v427 = vrcp.pop %v426
          %v428 = vld [vmem:[%s381] sm:$0xff]
          %430 = vset.pattern.permute.xlu0 0
          %431 = vperm.xlu0 %430, %v427
          %v432 = vpop.permute.xlu0 %431
          %v434 = vmul.f32 %v428, %v432
          %436 = vrot.lane.b32.xlu0 %v434, 16
          %v437 = vpop.permute.xlu0 %436
          %v439 = vsel %vm248, %v425, %v437
          %vm440 = vcmask 261120
          %441 = vst.msk [vmem:[%s226] sm:$0xff] %vm440, %v439
        $region44: #{tpu_custom_call.1} parent=27 // pred_fallthru
          _
        %s442 = sand.u32 %s107, 1
        %s443 = scalar_lea.sflag [#allocation7], %s442
        %s444 = sand.u32 %s107, 1
        %s445 = smul.addr %s444, 8
        %s446 = scalar_lea.vmem [#allocation10], %s445
        // Predicated region
        $region45: #{tpu_custom_call.1} parent=27 // pred_check
          %p447 = pneg %p117
        $region46: #{tpu_custom_call.1} parent=27 // pred_check_branch
          %449 = sbr.rel (%p447) target = $region48
        $region47: #{tpu_custom_call.1} parent=27 // pred_region
          %451 = vsyncadd %s443, 0
          %s452 = sadd.s32 %s28, %s27
          %s453 = smul.addr %s452, 8
          %s454 = scalar_lea.hbm %s2, %s453
          %s456 = sshll.u32 %s446, 4
          %s457 = int_to_ptr.vmem [resolvable:$true] %s456
          %s458 = sshll.u32 %s454, 4
          %s459 = int_to_ptr.hbm [resolvable:$true] %s458
          %461 = dma.vmem_to_hbm [thread:$0]  %s457, 128, %s459, %s443
        $region48: #{tpu_custom_call.1} parent=27 // pred_fallthru
          _
      $region28: #{tpu_custom_call.1} parent=5 // pred_fallthru
        _
      %p462 = scmp.le.s32.totalorder 2, %s17
      // Predicated region
      $region49: #{tpu_custom_call.1} parent=5 // pred_check
        %p463 = pneg %p462
      $region50: #{tpu_custom_call.1} parent=5 // pred_check_branch
        %465 = sbr.rel (%p463) target = $region52
      $region51: #{tpu_custom_call.1} parent=5 // pred_region
        %s466 = ssub.s32 %s17, 2
        // Predicated region
        $region53: #{tpu_custom_call.1} parent=51 // pred_check
          %p467 = pneg %p123
        $region54: #{tpu_custom_call.1} parent=51 // pred_check_branch
          %469 = sbr.rel (%p467) target = $region56
        $region55: #{tpu_custom_call.1} parent=51 // pred_region
          %s470 = sand.u32 %s108, 1
          %s471 = scalar_lea.sflag [#allocation7], %s470
          %s472 = sand.u32 %s108, 1
          %s473 = smul.addr %s472, 8
          %s474 = scalar_lea.vmem [#allocation10], %s473
          %476 = dma.done %s471, 128
        $region56: #{tpu_custom_call.1} parent=51 // pred_fallthru
          _
      $region52: #{tpu_custom_call.1} parent=5 // pred_fallthru
        _
    $region6: #{tpu_custom_call.1} parent=1 // loop_footer
      %s21 = sadd.s32 1, %s17
    $region7: #{tpu_custom_call.1} parent=1 // loop_footer_branch
      %16 = sbr.rel target = $region3
    $region8: #{tpu_custom_call.1} parent=1 // loop_exit
      _
    %477 = vsyncpa [#allocation6], 1
    %s478 = scalar_lea.sflag [#allocation6], 1
    %479 = vsyncpa %s478, 1
    %480 = vsyncpa [#allocation9], 1
    %s481 = scalar_lea.sflag [#allocation9], 1
    %482 = vsyncpa %s481, 1
    %483 = vsyncpa [#allocation7], 1
    %s484 = scalar_lea.sflag [#allocation7], 1
    %485 = vsyncpa %s484, 1

</llo_original>
